<compile_context>
chip_gen: v7x
topology: tpu7x:2x2x1
jax: 0.10.0
libtpu: 0.0.40
codegen_flags: <defaults>
</compile_context>

<pallas_src>
import math
from functools import partial

import jax
import jax.numpy as jnp
from jax.experimental import pallas as pl
from jax.experimental.pallas import tpu as pltpu

# Spherical-harmonic constants (identical to the PyTorch module, degree=4).
C0 = 0.28209479177387814
C1 = 0.4886025119029199
C2 = [1.0925484305920792, -1.0925484305920792, 0.31539156525252005,
      -1.0925484305920792, 0.5462742152960396]
C3 = [-0.5900435899266435, 2.890611442640554, -0.4570457994644658,
      0.3731763325901154, -0.4570457994644658, 1.445305721320277,
      -0.5900435899266435]

DEGREE = 4                 # only the module's default degree is implemented
OUT_DIM = DEGREE ** 2      # 16

_LANE = 128
_CHUNK = 2048              # points per inner-loop chunk (multiple of 128)
_MIN_SPLIT = 4096          # only force >=4 grid steps if each keeps >= this many pts


def _cdiv(a, b):
    return -(-a // b)


def _rup(a, m):
    return _cdiv(a, m) * m


def _sh_block(in_ref, out_ref, off, size):
    """Compute SH basis for `size` points at lane offset `off`, store to out_ref."""
    sl = pl.ds(off, size)
    # Compute in f32 regardless of input dtype (cast back at the store).
    x = in_ref[0, sl].astype(jnp.float32)
    y = in_ref[1, sl].astype(jnp.float32)
    z = in_ref[2, sl].astype(jnp.float32)

    xx, yy, zz = x * x, y * y, z * z
    xy, yz, xz = x * y, y * z, x * z

    # Shared polynomial subexpressions (named once).
    xx_m_yy = xx - yy
    four_zz_m_xx_m_yy = 4.0 * zz - xx - yy

    rows_lo = [
        jnp.full_like(x, C0),                        # l=0
        -C1 * y,                                     # l=1
        C1 * z,
        -C1 * x,
        C2[0] * xy,                                  # l=2
        C2[1] * yz,
        C2[2] * (2.0 * zz - xx - yy),
        C2[3] * xz,
    ]
    rows_hi = [
        C2[4] * xx_m_yy,
        C3[0] * y * (3.0 * xx - yy),                 # l=3
        C3[1] * xy * z,
        C3[2] * y * four_zz_m_xx_m_yy,
        C3[3] * z * (2.0 * zz - 3.0 * xx - 3.0 * yy),
        C3[4] * x * four_zz_m_xx_m_yy,
        C3[5] * z * xx_m_yy,
        C3[6] * x * (xx - 3.0 * yy),
    ]

    if jnp.dtype(out_ref.dtype).itemsize >= 4:
        # f32: two sublane-aligned (8, size) group stores.  rows_lo is dead
        # before rows_hi materializes, keeping live vregs bounded.
        out_ref[0:8, sl] = jnp.stack(rows_lo, axis=0).astype(out_ref.dtype)
        out_ref[8:16, sl] = jnp.stack(rows_hi, axis=0).astype(out_ref.dtype)
    else:
        # bf16/fp16: 16 rows == exactly one packed sublane tile -> single
        # unmasked store (an 8-row slice of a packed tile would be RMW).
        blk = jnp.concatenate(
            [jnp.stack(rows_lo, axis=0), jnp.stack(rows_hi, axis=0)], axis=0)
        out_ref[:, sl] = blk.astype(out_ref.dtype)


def sh_kernel(in_ref, out_ref, *, chunk):
    # in_ref:  (3, TILE)  -- x, y, z rows (lane axis = points)
    # out_ref: (16, TILE) -- SH basis values per point
    tile = in_ref.shape[1]
    nfull = tile // chunk
    rem = tile - nfull * chunk

    if nfull > 1:
        # Rolled loop (scf.for) so per-chunk intermediates' live ranges are
        # bounded -> no VMEM spill storm at large tiles.
        @pl.loop(0, nfull)
        def _(c):
            _sh_block(in_ref, out_ref, pl.multiple_of(c * chunk, _LANE), chunk)
    elif nfull == 1:
        _sh_block(in_ref, out_ref, 0, chunk)
    if rem:
        _sh_block(in_ref, out_ref, nfull * chunk, rem)


def _partition(n, requested_tile):
    """Split n points into (tile, steps, n_pad); tile is a multiple of 128."""
    n128 = _rup(max(n, 1), _LANE)
    req = max(_LANE, (requested_tile // _LANE) * _LANE)
    steps = _cdiv(n128, req)
    # v7x: the 1-D "parallel" grid is sharded across 2 TensorCores; keep >=2
    # steps per core so each core gets DMA/compute overlap, as long as every
    # step still carries a few thousand points.
    if n128 >= 4 * _MIN_SPLIT:
        steps = max(steps, 4)
    # Even step count -> balanced work across v7x's two TensorCores.
    if steps > 1 and steps % 2:
        steps += 1
    # Near-equal division: padding stays < 128 points per step (instead of up
    # to tile-128 total with a fixed-tile round-up).
    tile = _rup(_cdiv(n128, steps), _LANE)
    return tile, steps, steps * tile


def sh_encode(inp, *, tile=65536, out_dtype=None, component_major=False):
    """Pallas SHEncoder forward. inp: (..., 3) -> (..., 16).

    tile: requested points per grid step (large tiles amortize the ~0.35us/step
      overhead; the in-kernel chunk loop keeps register pressure low).
    out_dtype: output dtype (default: inp.dtype, matching PyTorch).  bf16
      output halves the dominant HBM write traffic on this mem-bound kernel.
    component_major: if True, return the kernel-native (16, N) layout directly
      (fast path: no wrapper-side output transpose pass at all).
    """
    orig_shape = inp.shape
    assert orig_shape[-1] == 3, "input_dim must be 3"
    out_dtype = jnp.dtype(out_dtype) if out_dtype is not None else inp.dtype
    n = math.prod(orig_shape[:-1])

    tile, steps, n_pad = _partition(n, tile)
    chunk = min(_CHUNK, tile)

    # Single pad+transpose pass over the (small) input: (n, 3) -> (3, n_pad).
    flat = inp.reshape(n, 3)
    if n_pad != n:
        flat = jnp.pad(flat, ((0, n_pad - n), (0, 0)))
    flat = flat.T  # (3, n_pad), component-major, lane axis = points

    in_bytes = 3 * n_pad * flat.dtype.itemsize
    out_bytes = OUT_DIM * n_pad * jnp.dtype(out_dtype).itemsize
    # Double-buffered block footprint + headroom; floor 32 MiB (v5e scoped
    # default is only 16 MiB), cap 48 MiB (v7x has 64 MiB/TC).
    vmem_need = 2 * tile * (3 * flat.dtype.itemsize
                            + OUT_DIM * jnp.dtype(out_dtype).itemsize)
    vmem_limit = min(48 * 1024 * 1024,
                     max(32 * 1024 * 1024, vmem_need + (4 << 20)))

    out = pl.pallas_call(
        partial(sh_kernel, chunk=chunk),
        out_shape=jax.ShapeDtypeStruct((OUT_DIM, n_pad), out_dtype),
        grid=(steps,),
        in_specs=[pl.BlockSpec((3, tile), lambda i: (0, i))],
        out_specs=pl.BlockSpec((OUT_DIM, tile), lambda i: (0, i)),
        compiler_params=pltpu.CompilerParams(
            dimension_semantics=("parallel",),
            vmem_limit_bytes=int(vmem_limit),
        ),
        cost_estimate=pl.CostEstimate(
            flops=60 * n_pad, transcendentals=0,
            bytes_accessed=in_bytes + out_bytes),
    )(flat)

    if component_major:
        return out if n_pad == n else out[:, :n]

    # TODO(synk): fuse this (16, N) -> (N, 16) relayout into the kernel once
    # the required Mosaic sublane->lane repack is confirmed to lower cleanly.
    if n_pad != n:
        out = out[:, :n]
    return out.T.reshape(*orig_shape[:-1], OUT_DIM)


def sh_reference(inp):
    """Pure-JAX reference mirroring the PyTorch forward (degree=4)."""
    x, y, z = inp[..., 0], inp[..., 1], inp[..., 2]
    xx, yy, zz = x * x, y * y, z * z
    xy, yz, xz = x * y, y * z, x * z
    cols = [
        jnp.full_like(x, C0),
        -C1 * y, C1 * z, -C1 * x,
        C2[0] * xy, C2[1] * yz, C2[2] * (2.0 * zz - xx - yy),
        C2[3] * xz, C2[4] * (xx - yy),
        C3[0] * y * (3.0 * xx - yy), C3[1] * xy * z,
        C3[2] * y * (4.0 * zz - xx - yy),
        C3[3] * z * (2.0 * zz - 3.0 * xx - 3.0 * yy),
        C3[4] * x * (4.0 * zz - xx - yy),
        C3[5] * z * (xx - yy), C3[6] * x * (xx - 3.0 * yy),
    ]
    return jnp.stack(cols, axis=-1)


if __name__ == "__main__":
    key = jax.random.PRNGKey(0)
    # Small, module-consistent input: batch of direction vectors, (..., 3).
    inp = jax.random.normal(key, (2, 128, 3), dtype=jnp.float32)
    inp = inp / jnp.linalg.norm(inp, axis=-1, keepdims=True)
    ref = sh_reference(inp)

    out = jax.block_until_ready(sh_encode(inp))
    assert out.shape == (2, 128, 16) and out.dtype == inp.dtype
    assert jnp.allclose(out, ref, atol=1e-6, rtol=1e-6)

    # Fast path: component-major (16, N) output, no wrapper transpose pass.
    cm = jax.block_until_ready(sh_encode(inp, component_major=True))
    assert cm.shape == (OUT_DIM, 256)
    assert jnp.allclose(cm.T.reshape(2, 128, 16), ref, atol=1e-6, rtol=1e-6)

    # bf16-output option (halves the dominant HBM write traffic).
    out_bf = jax.block_until_ready(sh_encode(inp, out_dtype=jnp.bfloat16))
    assert out_bf.dtype == jnp.bfloat16
    assert jnp.allclose(out_bf.astype(jnp.float32), ref, atol=3e-2, rtol=3e-2)

    # Multi-grid-step (forced >=4 even steps) + inner-loop + remainder + padded path.
    inp2 = jax.random.normal(jax.random.PRNGKey(1), (1, 20000, 3), jnp.float32)
    out2 = jax.block_until_ready(sh_encode(inp2, tile=8192))
    assert jnp.allclose(out2, sh_reference(inp2), atol=1e-6, rtol=1e-6)

    print("KERNEL_OK")
</pallas_src>

<mosaic_0001>
module attributes {stable_mosaic.version = 11 : i64} {
  func.func @sh_kernel(%arg0: i32, %arg1: memref<3x256xf32, #tpu.memory_space<vmem>>, %arg2: memref<16x256xf32, #tpu.memory_space<vmem>>) attributes {dimension_semantics = [#tpu.dimension_semantics<parallel>], iteration_bounds = array<i64: 1>, scalar_prefetch = 0 : i64, scratch_operands = 0 : i64, tpu.core_type = #tpu.core_type<tc>, window_params = [{transform_indices = @transform_0, window_bounds = array<i64: 3, 256>}, {transform_indices = @transform_1, window_bounds = array<i64: 16, 256>}]} {
    %c0 = arith.constant 0 : index
    %c0_0 = arith.constant 0 : index
    %0 = vector.load %arg1[%c0, %c0_0] : memref<3x256xf32, #tpu.memory_space<vmem>>, vector<1x256xf32>
    %1 = vector.shape_cast %0 : vector<1x256xf32> to vector<256xf32>
    %c1 = arith.constant 1 : index
    %c0_1 = arith.constant 0 : index
    %2 = vector.load %arg1[%c1, %c0_1] : memref<3x256xf32, #tpu.memory_space<vmem>>, vector<1x256xf32>
    %3 = vector.shape_cast %2 : vector<1x256xf32> to vector<256xf32>
    %c2 = arith.constant 2 : index
    %c0_2 = arith.constant 0 : index
    %4 = vector.load %arg1[%c2, %c0_2] : memref<3x256xf32, #tpu.memory_space<vmem>>, vector<1x256xf32>
    %5 = vector.shape_cast %4 : vector<1x256xf32> to vector<256xf32>
    %6 = arith.mulf %1, %1 : vector<256xf32>
    %7 = arith.mulf %3, %3 : vector<256xf32>
    %8 = arith.mulf %5, %5 : vector<256xf32>
    %9 = arith.mulf %1, %3 : vector<256xf32>
    %10 = arith.mulf %3, %5 : vector<256xf32>
    %11 = arith.mulf %1, %5 : vector<256xf32>
    %12 = arith.subf %6, %7 : vector<256xf32>
    %cst = arith.constant 4.000000e+00 : f32
    %13 = vector.broadcast %cst : f32 to vector<256xf32>
    %14 = arith.mulf %13, %8 : vector<256xf32>
    %15 = arith.subf %14, %6 : vector<256xf32>
    %16 = arith.subf %15, %7 : vector<256xf32>
    %cst_3 = arith.constant 0.282094806 : f32
    %17 = vector.broadcast %cst_3 : f32 to vector<256xf32>
    %cst_4 = arith.constant -0.488602519 : f32
    %18 = vector.broadcast %cst_4 : f32 to vector<256xf32>
    %19 = arith.mulf %18, %3 : vector<256xf32>
    %cst_5 = arith.constant 0.488602519 : f32
    %20 = vector.broadcast %cst_5 : f32 to vector<256xf32>
    %21 = arith.mulf %20, %5 : vector<256xf32>
    %cst_6 = arith.constant -0.488602519 : f32
    %22 = vector.broadcast %cst_6 : f32 to vector<256xf32>
    %23 = arith.mulf %22, %1 : vector<256xf32>
    %cst_7 = arith.constant 1.09254849 : f32
    %24 = vector.broadcast %cst_7 : f32 to vector<256xf32>
    %25 = arith.mulf %24, %9 : vector<256xf32>
    %cst_8 = arith.constant -1.09254849 : f32
    %26 = vector.broadcast %cst_8 : f32 to vector<256xf32>
    %27 = arith.mulf %26, %10 : vector<256xf32>
    %cst_9 = arith.constant 2.000000e+00 : f32
    %28 = vector.broadcast %cst_9 : f32 to vector<256xf32>
    %29 = arith.mulf %28, %8 : vector<256xf32>
    %30 = arith.subf %29, %6 : vector<256xf32>
    %31 = arith.subf %30, %7 : vector<256xf32>
    %cst_10 = arith.constant 0.31539157 : f32
    %32 = vector.broadcast %cst_10 : f32 to vector<256xf32>
    %33 = arith.mulf %32, %31 : vector<256xf32>
    %cst_11 = arith.constant -1.09254849 : f32
    %34 = vector.broadcast %cst_11 : f32 to vector<256xf32>
    %35 = arith.mulf %34, %11 : vector<256xf32>
    %cst_12 = arith.constant 0.546274245 : f32
    %36 = vector.broadcast %cst_12 : f32 to vector<256xf32>
    %37 = arith.mulf %36, %12 : vector<256xf32>
    %cst_13 = arith.constant -0.590043604 : f32
    %38 = vector.broadcast %cst_13 : f32 to vector<256xf32>
    %39 = arith.mulf %38, %3 : vector<256xf32>
    %cst_14 = arith.constant 3.000000e+00 : f32
    %40 = vector.broadcast %cst_14 : f32 to vector<256xf32>
    %41 = arith.mulf %40, %6 : vector<256xf32>
    %42 = arith.subf %41, %7 : vector<256xf32>
    %43 = arith.mulf %39, %42 : vector<256xf32>
    %cst_15 = arith.constant 2.89061141 : f32
    %44 = vector.broadcast %cst_15 : f32 to vector<256xf32>
    %45 = arith.mulf %44, %9 : vector<256xf32>
    %46 = arith.mulf %45, %5 : vector<256xf32>
    %cst_16 = arith.constant -0.457045794 : f32
    %47 = vector.broadcast %cst_16 : f32 to vector<256xf32>
    %48 = arith.mulf %47, %3 : vector<256xf32>
    %49 = arith.mulf %48, %16 : vector<256xf32>
    %cst_17 = arith.constant 0.373176336 : f32
    %50 = vector.broadcast %cst_17 : f32 to vector<256xf32>
    %51 = arith.mulf %50, %5 : vector<256xf32>
    %cst_18 = arith.constant 2.000000e+00 : f32
    %52 = vector.broadcast %cst_18 : f32 to vector<256xf32>
    %53 = arith.mulf %52, %8 : vector<256xf32>
    %cst_19 = arith.constant 3.000000e+00 : f32
    %54 = vector.broadcast %cst_19 : f32 to vector<256xf32>
    %55 = arith.mulf %54, %6 : vector<256xf32>
    %56 = arith.subf %53, %55 : vector<256xf32>
    %cst_20 = arith.constant 3.000000e+00 : f32
    %57 = vector.broadcast %cst_20 : f32 to vector<256xf32>
    %58 = arith.mulf %57, %7 : vector<256xf32>
    %59 = arith.subf %56, %58 : vector<256xf32>
    %60 = arith.mulf %51, %59 : vector<256xf32>
    %cst_21 = arith.constant -0.457045794 : f32
    %61 = vector.broadcast %cst_21 : f32 to vector<256xf32>
    %62 = arith.mulf %61, %1 : vector<256xf32>
    %63 = arith.mulf %62, %16 : vector<256xf32>
    %cst_22 = arith.constant 1.44530571 : f32
    %64 = vector.broadcast %cst_22 : f32 to vector<256xf32>
    %65 = arith.mulf %64, %5 : vector<256xf32>
    %66 = arith.mulf %65, %12 : vector<256xf32>
    %cst_23 = arith.constant -0.590043604 : f32
    %67 = vector.broadcast %cst_23 : f32 to vector<256xf32>
    %68 = arith.mulf %67, %1 : vector<256xf32>
    %cst_24 = arith.constant 3.000000e+00 : f32
    %69 = vector.broadcast %cst_24 : f32 to vector<256xf32>
    %70 = arith.mulf %69, %7 : vector<256xf32>
    %71 = arith.subf %6, %70 : vector<256xf32>
    %72 = arith.mulf %68, %71 : vector<256xf32>
    %73 = vector.shape_cast %17 : vector<256xf32> to vector<1x256xf32>
    %74 = vector.shape_cast %19 : vector<256xf32> to vector<1x256xf32>
    %75 = vector.shape_cast %21 : vector<256xf32> to vector<1x256xf32>
    %76 = vector.shape_cast %23 : vector<256xf32> to vector<1x256xf32>
    %77 = vector.shape_cast %25 : vector<256xf32> to vector<1x256xf32>
    %78 = vector.shape_cast %27 : vector<256xf32> to vector<1x256xf32>
    %79 = vector.shape_cast %33 : vector<256xf32> to vector<1x256xf32>
    %80 = vector.shape_cast %35 : vector<256xf32> to vector<1x256xf32>
    %81 = tpu.concatenate %73, %74, %75, %76, %77, %78, %79, %80 in 0 : vector<1x256xf32>, vector<1x256xf32>, vector<1x256xf32>, vector<1x256xf32>, vector<1x256xf32>, vector<1x256xf32>, vector<1x256xf32>, vector<1x256xf32> -> vector<8x256xf32>
    %c0_25 = arith.constant 0 : index
    %c0_26 = arith.constant 0 : index
    %82 = vector.load %arg2[%c0_25, %c0_26] : memref<16x256xf32, #tpu.memory_space<vmem>>, vector<8x256xf32>
    tpu.vector_store %arg2[%c0_25, %c0_26], %81 {strides = array<i32>} : memref<16x256xf32, #tpu.memory_space<vmem>>, vector<8x256xf32>,
    %83 = vector.shape_cast %37 : vector<256xf32> to vector<1x256xf32>
    %84 = vector.shape_cast %43 : vector<256xf32> to vector<1x256xf32>
    %85 = vector.shape_cast %46 : vector<256xf32> to vector<1x256xf32>
    %86 = vector.shape_cast %49 : vector<256xf32> to vector<1x256xf32>
    %87 = vector.shape_cast %60 : vector<256xf32> to vector<1x256xf32>
    %88 = vector.shape_cast %63 : vector<256xf32> to vector<1x256xf32>
    %89 = vector.shape_cast %66 : vector<256xf32> to vector<1x256xf32>
    %90 = vector.shape_cast %72 : vector<256xf32> to vector<1x256xf32>
    %91 = tpu.concatenate %83, %84, %85, %86, %87, %88, %89, %90 in 0 : vector<1x256xf32>, vector<1x256xf32>, vector<1x256xf32>, vector<1x256xf32>, vector<1x256xf32>, vector<1x256xf32>, vector<1x256xf32>, vector<1x256xf32> -> vector<8x256xf32>
    %c8 = arith.constant 8 : index
    %c0_27 = arith.constant 0 : index
    %92 = vector.load %arg2[%c8, %c0_27] : memref<16x256xf32, #tpu.memory_space<vmem>>, vector<8x256xf32>
    tpu.vector_store %arg2[%c8, %c0_27], %91 {strides = array<i32>} : memref<16x256xf32, #tpu.memory_space<vmem>>, vector<8x256xf32>,
    return
  }
  func.func @transform_0(%arg0: i32) -> (i32, i32) {
    %c0_i32 = arith.constant 0 : i32
    %c0_i32_0 = arith.constant 0 : i32
    return %c0_i32, %arg0 : i32, i32
  }
  func.func @transform_1(%arg0: i32) -> (i32, i32) {
    %c0_i32 = arith.constant 0 : i32
    %c0_i32_0 = arith.constant 0 : i32
    return %c0_i32, %arg0 : i32, i32
  }
}

</mosaic_0001>

<llo_original>
// kernel: tpu_custom_call.1
$region0: #{tpu_custom_call.1}
  #allocation0 [shape = 'u32[]', space=smem, size = 0x4, offset = 0x4, fixed_abs, tag = 'smem constant byte address 0x4 - core index']
  #allocation1 [shape = 'u32[144,128]{1,0:T(1,128)}', space=vmem, size = 0x12000, scoped, tag = 'internal scratch']
  %s0 = inlined_call_operand.hbm [shape: f32[3,256], index: 0, kind: input, shape index: {}]
  %s1 = inlined_call_operand.hbm [shape: f32[16,256], index: 1, kind: output, shape index: {}]
  %s2 = sld [smem:[#allocation0]]
  $region18: #{tpu_custom_call.1} parent=0
    _
  %s4 = ssub.s32 1, %s2
  %s5 = scalar_select 0, %s4, %s2
  $region1: #{tpu_custom_call.1} parent=0
    #allocation2 [shape = 'u8[4096]{0}', space=vmem, size = 0x1000, scoped, tag = 'input window, operand 0, single buffered']
    #allocation3 [shape = 's32[1]{0}', space=sflag, size = 0x4, scoped, tag = 'scoped memory for tpu_custom_call.1']
    #allocation4 [shape = 's32[1]{0}', space=sflag, size = 0x4, scoped, tag = 'scoped memory for tpu_custom_call.1']
    #allocation5 [shape = 'u8[16384]{0}', space=vmem, size = 0x4000, scoped, tag = 'output window, operand 0, single buffered']
    %6 = vsyncpa [#allocation3], 0
    %7 = vsyncpa [#allocation4], 0
    // Predicated region
    $region2: #{tpu_custom_call.1} parent=1 // pred_check
      _
    $region3: #{tpu_custom_call.1} parent=1 // pred_check_branch
      %9 = sbr.rel (0) target = $region5
    $region4: #{tpu_custom_call.1} parent=1 // pred_region
      %s11 = ssub.s32 128, 128
      %12 = vsyncadd [#allocation3], %s11
      %s14 = sshll.u32 [#allocation2], 4
      %s15 = int_to_ptr.vmem [resolvable:$true] %s14
      %17 = dma.hbm_to_vmem [thread:$0]  %s0, 128, %s15, [#allocation3]
    $region5: #{tpu_custom_call.1} parent=1 // pred_fallthru
      _
    // Predicated region
    $region6: #{tpu_custom_call.1} parent=1 // pred_check
      _
    $region7: #{tpu_custom_call.1} parent=1 // pred_check_branch
      %19 = sbr.rel (0) target = $region9
    $region8: #{tpu_custom_call.1} parent=1 // pred_region
      %20 = dma.done [#allocation3], 128
    $region9: #{tpu_custom_call.1} parent=1 // pred_fallthru
      _
    %v21 = vld [vmem:[#allocation2] ss:$4 sm:$0x3]
    %s22 = scalar_lea.vmem [#allocation2], 1
    %v23 = vld [vmem:[%s22] ss:$4 sm:$0x3]
    %s24 = scalar_lea.vmem [#allocation2], 2
    %v25 = vld [vmem:[%s24] ss:$4 sm:$0x3]
    %v26 = vmul.f32 %v21, %v21
    %v27 = vmul.f32 %v23, %v23
    %v28 = vmul.f32 %v25, %v25
    %v29 = vmul.f32 %v21, %v23
    %v30 = vmul.f32 %v23, %v25
    %v31 = vmul.f32 %v21, %v25
    %v32 = vsub.f32 %v26, %v27
    %v33 = vmul.f32 %v28, 4.0
    %v34 = vsub.f32 %v33, %v26
    %v35 = vsub.f32 %v34, %v27
    %v36 = vmul.f32 %v23, -0.48860252
    %v37 = vmul.f32 %v25, 0.48860252
    %v38 = vmul.f32 %v21, -0.48860252
    %v39 = vmul.f32 %v29, 1.0925485
    %v40 = vmul.f32 %v30, -1.0925485
    %v41 = vmul.f32 %v28, 2.0
    %v42 = vsub.f32 %v41, %v26
    %v43 = vsub.f32 %v42, %v27
    %v44 = vmul.f32 %v43, 0.31539157
    %v45 = vmul.f32 %v31, -1.0925485
    %v46 = vmul.f32 %v32, 0.54627424
    %v47 = vmul.f32 %v23, -0.5900436
    %v48 = vmul.f32 %v26, 3.0
    %v49 = vsub.f32 %v48, %v27
    %v50 = vmul.f32 %v47, %v49
    %v51 = vmul.f32 %v29, 2.8906114
    %v52 = vmul.f32 %v51, %v25
    %v53 = vmul.f32 %v23, -0.4570458
    %v54 = vmul.f32 %v53, %v35
    %v55 = vmul.f32 %v25, 0.37317634
    %v56 = vsub.f32 %v41, %v48
    %v57 = vmul.f32 %v27, 3.0
    %v58 = vsub.f32 %v56, %v57
    %v59 = vmul.f32 %v55, %v58
    %v60 = vmul.f32 %v21, -0.4570458
    %v61 = vmul.f32 %v60, %v35
    %v62 = vmul.f32 %v25, 1.4453057
    %v63 = vmul.f32 %v62, %v32
    %v64 = vmul.f32 %v21, -0.5900436
    %v65 = vsub.f32 %v26, %v57
    %v66 = vmul.f32 %v64, %v65
    %v68 = vlaneseq
    %v69 = vshrl.u32 %v68, 7
    %v70 = vsub.s32 0, %v69
    %v71 = vrot.slane %v36, %v70
    %v72 = vlaneseq
    %v73 = vshrl.u32 %v72, 7
    %v74 = vsub.s32 1, %v73
    %v75 = vrot.slane %v36, %v74
    %v79 = vlaneseq
    %v80 = vshrl.u32 %v79, 7
    %v81 = vsub.s32 0, %v80
    %v82 = vrot.slane %v37, %v81
    %v83 = vlaneseq
    %v84 = vshrl.u32 %v83, 7
    %v85 = vsub.s32 1, %v84
    %v86 = vrot.slane %v37, %v85
    %v90 = vlaneseq
    %v91 = vshrl.u32 %v90, 7
    %v92 = vsub.s32 0, %v91
    %v93 = vrot.slane %v38, %v92
    %v94 = vlaneseq
    %v95 = vshrl.u32 %v94, 7
    %v96 = vsub.s32 1, %v95
    %v97 = vrot.slane %v38, %v96
    %v101 = vlaneseq
    %v102 = vshrl.u32 %v101, 7
    %v103 = vsub.s32 0, %v102
    %v104 = vrot.slane %v39, %v103
    %v105 = vlaneseq
    %v106 = vshrl.u32 %v105, 7
    %v107 = vsub.s32 1, %v106
    %v108 = vrot.slane %v39, %v107
    %v112 = vlaneseq
    %v113 = vshrl.u32 %v112, 7
    %v114 = vsub.s32 0, %v113
    %v115 = vrot.slane %v40, %v114
    %v116 = vlaneseq
    %v117 = vshrl.u32 %v116, 7
    %v118 = vsub.s32 1, %v117
    %v119 = vrot.slane %v40, %v118
    %v123 = vlaneseq
    %v124 = vshrl.u32 %v123, 7
    %v125 = vsub.s32 0, %v124
    %v126 = vrot.slane %v44, %v125
    %v127 = vlaneseq
    %v128 = vshrl.u32 %v127, 7
    %v129 = vsub.s32 1, %v128
    %v130 = vrot.slane %v44, %v129
    %v134 = vlaneseq
    %v135 = vshrl.u32 %v134, 7
    %v136 = vsub.s32 0, %v135
    %v137 = vrot.slane %v45, %v136
    %v138 = vlaneseq
    %v139 = vshrl.u32 %v138, 7
    %v140 = vsub.s32 1, %v139
    %v141 = vrot.slane %v45, %v140
    %vm144 = vcmask 1040384
    %v145 = vsel %vm144, 0.2820948, %v71
    %v146 = vsel %vm144, 0.2820948, %v75
    %vm147 = vcmask 1041408
    %v148 = vsel %vm147, %v145, %v82
    %v149 = vsel %vm147, %v146, %v86
    %vm150 = vcmask 1042432
    %v151 = vsel %vm150, %v148, %v93
    %v152 = vsel %vm150, %v149, %v97
    %vm153 = vcmask 1043456
    %v154 = vsel %vm153, %v151, %v104
    %v155 = vsel %vm153, %v152, %v108
    %vm156 = vcmask 1044480
    %v157 = vsel %vm156, %v154, %v115
    %v158 = vsel %vm156, %v155, %v119
    %vm159 = vcmask 1045504
    %v160 = vsel %vm159, %v157, %v126
    %v161 = vsel %vm159, %v158, %v130
    %vm162 = vcmask 1046528
    %v163 = vsel %vm162, %v160, %v137
    %v164 = vsel %vm162, %v161, %v141
    %165 = vst [vmem:[#allocation5] sm:$0xff] %v163
    %166 = vst [vmem:[#allocation5 + $0x8] sm:$0xff] %v164
    %v168 = vlaneseq
    %v169 = vshrl.u32 %v168, 7
    %v170 = vsub.s32 0, %v169
    %v171 = vrot.slane %v46, %v170
    %v172 = vlaneseq
    %v173 = vshrl.u32 %v172, 7
    %v174 = vsub.s32 1, %v173
    %v175 = vrot.slane %v46, %v174
    %v179 = vlaneseq
    %v180 = vshrl.u32 %v179, 7
    %v181 = vsub.s32 0, %v180
    %v182 = vrot.slane %v50, %v181
    %v183 = vlaneseq
    %v184 = vshrl.u32 %v183, 7
    %v185 = vsub.s32 1, %v184
    %v186 = vrot.slane %v50, %v185
    %v190 = vlaneseq
    %v191 = vshrl.u32 %v190, 7
    %v192 = vsub.s32 0, %v191
    %v193 = vrot.slane %v52, %v192
    %v194 = vlaneseq
    %v195 = vshrl.u32 %v194, 7
    %v196 = vsub.s32 1, %v195
    %v197 = vrot.slane %v52, %v196
    %v201 = vlaneseq
    %v202 = vshrl.u32 %v201, 7
    %v203 = vsub.s32 0, %v202
    %v204 = vrot.slane %v54, %v203
    %v205 = vlaneseq
    %v206 = vshrl.u32 %v205, 7
    %v207 = vsub.s32 1, %v206
    %v208 = vrot.slane %v54, %v207
    %v212 = vlaneseq
    %v213 = vshrl.u32 %v212, 7
    %v214 = vsub.s32 0, %v213
    %v215 = vrot.slane %v59, %v214
    %v216 = vlaneseq
    %v217 = vshrl.u32 %v216, 7
    %v218 = vsub.s32 1, %v217
    %v219 = vrot.slane %v59, %v218
    %v223 = vlaneseq
    %v224 = vshrl.u32 %v223, 7
    %v225 = vsub.s32 0, %v224
    %v226 = vrot.slane %v61, %v225
    %v227 = vlaneseq
    %v228 = vshrl.u32 %v227, 7
    %v229 = vsub.s32 1, %v228
    %v230 = vrot.slane %v61, %v229
    %v234 = vlaneseq
    %v235 = vshrl.u32 %v234, 7
    %v236 = vsub.s32 0, %v235
    %v237 = vrot.slane %v63, %v236
    %v238 = vlaneseq
    %v239 = vshrl.u32 %v238, 7
    %v240 = vsub.s32 1, %v239
    %v241 = vrot.slane %v63, %v240
    %v245 = vlaneseq
    %v246 = vshrl.u32 %v245, 7
    %v247 = vsub.s32 0, %v246
    %v248 = vrot.slane %v66, %v247
    %v249 = vlaneseq
    %v250 = vshrl.u32 %v249, 7
    %v251 = vsub.s32 1, %v250
    %v252 = vrot.slane %v66, %v251
    %v255 = vsel %vm144, %v171, %v182
    %v256 = vsel %vm144, %v175, %v186
    %v257 = vsel %vm147, %v255, %v193
    %v258 = vsel %vm147, %v256, %v197
    %v259 = vsel %vm150, %v257, %v204
    %v260 = vsel %vm150, %v258, %v208
    %v261 = vsel %vm153, %v259, %v215
    %v262 = vsel %vm153, %v260, %v219
    %v263 = vsel %vm156, %v261, %v226
    %v264 = vsel %vm156, %v262, %v230
    %v265 = vsel %vm159, %v263, %v237
    %v266 = vsel %vm159, %v264, %v241
    %v267 = vsel %vm162, %v265, %v248
    %v268 = vsel %vm162, %v266, %v252
    %269 = vst [vmem:[#allocation5 + $0x10] sm:$0xff] %v267
    %270 = vst [vmem:[#allocation5 + $0x18] sm:$0xff] %v268
    // Predicated region
    $region10: #{tpu_custom_call.1} parent=1 // pred_check
      _
    $region11: #{tpu_custom_call.1} parent=1 // pred_check_branch
      %272 = sbr.rel (0) target = $region13
    $region12: #{tpu_custom_call.1} parent=1 // pred_region
      %s274 = ssub.s32 512, 512
      %275 = vsyncadd [#allocation4], %s274
      %s276 = sshll.u32 [#allocation5], 4
      %s277 = int_to_ptr.vmem [resolvable:$true] %s276
      %282 = dma.vmem_to_hbm [thread:$0]  %s277, 512, %s1, [#allocation4], 256, 256, 16
    $region13: #{tpu_custom_call.1} parent=1 // pred_fallthru
      _
    // Predicated region
    $region14: #{tpu_custom_call.1} parent=1 // pred_check
      _
    $region15: #{tpu_custom_call.1} parent=1 // pred_check_branch
      %284 = sbr.rel (0) target = $region17
    $region16: #{tpu_custom_call.1} parent=1 // pred_region
      %285 = dma.done [#allocation4], 512
    $region17: #{tpu_custom_call.1} parent=1 // pred_fallthru
      _
    %286 = vsyncpa [#allocation3], 1
    %287 = vsyncpa [#allocation4], 1

</llo_original>
